<compile_context>
chip_gen: v7x
topology: tpu7x:2x2x1
jax: 0.10.0
libtpu: 0.0.40
codegen_flags: <defaults>
</compile_context>

<pallas_src>
import random
import numpy as np

import jax
import jax.numpy as jnp
from jax.experimental import pallas as pl
from jax.experimental.pallas import tpu as pltpu


def _round_up(x: int, m: int) -> int:
    return ((x + m - 1) // m) * m


# ----------------------------------------------------------------------------
# Pallas kernel: tiled (M, D, K) matmul of the binary neighbor mask with the
# embedding matrix; per-row mean scaling (1/num_neigh) applied once in the
# K-last finalize on the [tm, tn] accumulator.
# ----------------------------------------------------------------------------
def _mean_agg_kernel(mask_ref, emb_ref, inv_ref, out_ref, acc_ref):
    @pl.when(pl.program_id(2) == 0)
    def _init():
        acc_ref[...] = jnp.zeros_like(acc_ref)

    # mask tile stored as bf16 (exact 0/1 -> lossless); upcast for the f32 dot.
    acc_ref[...] += jnp.dot(mask_ref[...].astype(jnp.float32), emb_ref[...],
                            preferred_element_type=jnp.float32)

    @pl.when(pl.program_id(2) == pl.num_programs(2) - 1)
    def _finalize():
        out_ref[...] = (acc_ref[...] * inv_ref[...]).astype(out_ref.dtype)


def mean_aggregate_pallas(mask, embed_matrix, inv_deg, *,
                          tm=256, tk=512, tn=256):
    """mask: [N, U] (0/1), embed_matrix: [U, D] f32, inv_deg: [N] or [N,1] f32
    -> [N, D] f32 = (mask * inv_deg[:, None]) @ embed_matrix."""
    N, U = mask.shape
    U2, D = embed_matrix.shape
    assert U == U2

    # Clamp tile sizes to the (padded) problem so tiny problems stay 1-tile.
    tm = min(tm, _round_up(max(N, 1), 8))
    tk = min(tk, _round_up(max(U, 1), 128))
    tn = min(tn, _round_up(max(D, 1), 128))

    N_pad = _round_up(N, tm)
    U_pad = _round_up(U, tk)
    D_pad = _round_up(D, tn)

    # Zero padding is inert for both the matmul and the row scaling.
    mask_p = jnp.pad(jnp.asarray(mask).astype(jnp.bfloat16),
                     ((0, N_pad - N), (0, U_pad - U)))
    emb_p = jnp.pad(jnp.asarray(embed_matrix).astype(jnp.float32),
                    ((0, U_pad - U), (0, D_pad - D)))
    inv_p = jnp.pad(jnp.asarray(inv_deg).astype(jnp.float32).reshape(N, 1),
                    ((0, N_pad - N), (0, 0)))

    grid = (N_pad // tm, D_pad // tn, U_pad // tk)

    out_p = pl.pallas_call(
        _mean_agg_kernel,
        out_shape=jax.ShapeDtypeStruct((N_pad, D_pad), jnp.float32),
        grid_spec=pltpu.PrefetchScalarGridSpec(
            num_scalar_prefetch=0,
            grid=grid,
            in_specs=[
                pl.BlockSpec((tm, tk), lambda i, j, k: (i, k)),   # mask (bf16)
                pl.BlockSpec((tk, tn), lambda i, j, k: (k, j)),   # embeddings
                pl.BlockSpec((tm, 1), lambda i, j, k: (i, 0)),    # 1/num_neigh
            ],
            out_specs=pl.BlockSpec((tm, tn), lambda i, j, k: (i, j)),
            scratch_shapes=[pltpu.VMEM((tm, tn), jnp.float32)],
        ),
        compiler_params=pltpu.CompilerParams(
            dimension_semantics=("parallel", "parallel", "arbitrary")),
    )(mask_p, emb_p, inv_p)

    return out_p[:N, :D]


# ----------------------------------------------------------------------------
# MeanAggregator: Python glue (sampling / mask construction) + Pallas hot path
# ----------------------------------------------------------------------------
class MeanAggregator:
    def __init__(self, features, gcn=False):
        # `features` is a function: array of node ids -> [n, D] embeddings
        self.features = features
        self.gcn = gcn

    def forward(self, nodes, to_neighs, num_sample=10):
        _set = set
        if num_sample is not None:
            _sample = random.sample
            sample_neighs = [
                _set(_sample(list(to_neigh), num_sample))
                if len(to_neigh) >= num_sample else _set(to_neigh)
                for to_neigh in to_neighs
            ]
        else:
            sample_neighs = [_set(tn) for tn in to_neighs]
        if self.gcn:
            sample_neighs = [sn | _set([nodes[i]])
                             for i, sn in enumerate(sample_neighs)]

        unique_nodes_list = list(set.union(*sample_neighs))
        unique_nodes = {n: i for i, n in enumerate(unique_nodes_list)}

        num_rows = len(sample_neighs)
        num_cols = len(unique_nodes)

        # Vectorized scatter for the binary membership mask.
        lens = np.array([len(sn) for sn in sample_neighs], dtype=np.int64)
        rows = np.repeat(np.arange(num_rows, dtype=np.int64), lens)
        cols = np.array([unique_nodes[n] for sn in sample_neighs for n in sn],
                        dtype=np.int64)
        mask_np = np.zeros((num_rows, num_cols), dtype=np.float32)
        mask_np[rows, cols] = 1.0

        # Per-row neighbor counts are known in the glue -> no in-kernel row sum.
        # TODO(synk): torch yields NaN on empty rows; we guard with max(deg, 1).
        inv_deg = 1.0 / np.maximum(lens.astype(np.float32), 1.0)

        embed_matrix = self.features(
            jnp.asarray(unique_nodes_list, dtype=jnp.int32))        # [U, D]

        # Hot path (tiled matmul + mean scaling) runs in the Pallas kernel.
        to_feats = mean_aggregate_pallas(
            jnp.asarray(mask_np), embed_matrix, jnp.asarray(inv_deg))  # [N, D]
        return to_feats


# ----------------------------------------------------------------------------
# Pure-JAX reference for validation
# ----------------------------------------------------------------------------
def _reference(mask, embed_matrix):
    num_neigh = jnp.sum(mask, axis=1, keepdims=True)
    num_neigh = jnp.maximum(num_neigh, 1.0)
    return jnp.dot(mask / num_neigh, embed_matrix,
                   precision=jax.lax.Precision.HIGHEST)


if __name__ == "__main__":
    random.seed(0)

    NUM_TOTAL_NODES = 40   # size of the synthetic embedding table
    EMBED_DIM = 32
    NUM_NODES = 8          # number of target nodes aggregated in this call
    NUM_SAMPLE = 10

    # Deterministic synthetic embedding table; `features` is a lookup function,
    # mirroring the PyTorch usage where self.features(LongTensor) -> embeddings.
    key = jax.random.PRNGKey(0)
    embedding_table = jax.random.normal(
        key, (NUM_TOTAL_NODES, EMBED_DIM), dtype=jnp.float32)

    def features_fn(node_ids):
        return jnp.take(embedding_table, node_ids, axis=0)

    # Deterministic synthetic graph: each target node has 5..15 neighbors.
    nodes = list(range(NUM_NODES))
    to_neighs = []
    for i in range(NUM_NODES):
        deg = 5 + (i * 3) % 11           # 5..15 neighbors
        neighs = {(i * 7 + j * 3 + 1) % NUM_TOTAL_NODES for j in range(deg)}
        to_neighs.append(neighs)

    agg = MeanAggregator(features_fn, gcn=False)
    out = agg.forward(nodes, to_neighs, num_sample=NUM_SAMPLE)
    out = jax.block_until_ready(out)

    # Rebuild the identical mask deterministically for the reference check.
    random.seed(0)
    sample_neighs = [
        set(random.sample(list(tn), NUM_SAMPLE)) if len(tn) >= NUM_SAMPLE
        else set(tn) for tn in to_neighs
    ]
    unique_nodes_list = list(set.union(*sample_neighs))
    unique_nodes = {n: i for i, n in enumerate(unique_nodes_list)}
    mask_np = np.zeros((len(sample_neighs), len(unique_nodes)),
                       dtype=np.float32)
    cols = [unique_nodes[n] for sn in sample_neighs for n in sn]
    rows = [i for i in range(len(sample_neighs))
            for _ in range(len(sample_neighs[i]))]
    mask_np[rows, cols] = 1.0
    ref = _reference(jnp.asarray(mask_np),
                     features_fn(jnp.asarray(unique_nodes_list,
                                             dtype=jnp.int32)))
    assert out.shape == (NUM_NODES, EMBED_DIM)
    assert jnp.allclose(out, ref, atol=1e-4, rtol=1e-4)

    # Larger randomized check: exercises multi-tile (M, D, K) grid, the K-axis
    # accumulator init/finalize, and the zero-padding path.
    kmask, kemb = jax.random.split(jax.random.PRNGKey(2))
    big_mask = (jax.random.uniform(kmask, (300, 700)) < 0.05).astype(jnp.float32)
    big_emb = jax.random.normal(kemb, (700, 160), dtype=jnp.float32)
    big_deg = jnp.maximum(jnp.sum(big_mask, axis=1), 1.0)
    big_out = mean_aggregate_pallas(big_mask, big_emb, 1.0 / big_deg)
    big_out = jax.block_until_ready(big_out)
    big_ref = _reference(big_mask, big_emb)
    assert big_out.shape == (300, 160)
    assert jnp.allclose(big_out, big_ref, atol=1e-4, rtol=1e-4)

    print("KERNEL_OK")
</pallas_src>

<mosaic_0001>
module attributes {stable_mosaic.version = 11 : i64} {
  func.func @_mean_agg_kernel(%arg0: i32, %arg1: i32, %arg2: i32, %arg3: memref<8x128xbf16, #tpu.memory_space<vmem>>, %arg4: memref<128x128xf32, #tpu.memory_space<vmem>>, %arg5: memref<8x1xf32, #tpu.memory_space<vmem>>, %arg6: memref<8x128xf32, #tpu.memory_space<vmem>>, %arg7: memref<8x128xf32, #tpu.memory_space<vmem>>) attributes {dimension_semantics = [#tpu.dimension_semantics<parallel>, #tpu.dimension_semantics<parallel>, #tpu.dimension_semantics<arbitrary>], iteration_bounds = array<i64: 1, 1, 1>, scalar_prefetch = 0 : i64, scratch_operands = 1 : i64, tpu.core_type = #tpu.core_type<tc>, window_params = [{transform_indices = @transform_0, window_bounds = array<i64: 8, 128>}, {transform_indices = @transform_1, window_bounds = array<i64: 128, 128>}, {transform_indices = @transform_2, window_bounds = array<i64: 8, 1>}, {transform_indices = @transform_3, window_bounds = array<i64: 8, 128>}]} {
    %c0_i32 = arith.constant 0 : i32
    %0 = arith.cmpi eq, %arg2, %c0_i32 : i32
    %1 = arith.extui %0 : i1 to i32
    %c0_i32_0 = arith.constant 0 : i32
    %2 = arith.cmpi ne, %1, %c0_i32_0 : i32
    scf.if %2 {
      %cst_10 = arith.constant 0.000000e+00 : f32
      %13 = vector.broadcast %cst_10 : f32 to vector<8x128xf32>
      %c0_11 = arith.constant 0 : index
      %c0_12 = arith.constant 0 : index
      %14 = vector.load %arg7[%c0_11, %c0_12] : memref<8x128xf32, #tpu.memory_space<vmem>>, vector<8x128xf32>
      tpu.vector_store %arg7[%c0_11, %c0_12], %13 {strides = array<i32>} : memref<8x128xf32, #tpu.memory_space<vmem>>, vector<8x128xf32>,
    } else {
    }
    %c0 = arith.constant 0 : index
    %c0_1 = arith.constant 0 : index
    %3 = vector.load %arg7[%c0, %c0_1] : memref<8x128xf32, #tpu.memory_space<vmem>>, vector<8x128xf32>
    %c0_2 = arith.constant 0 : index
    %c0_3 = arith.constant 0 : index
    %4 = vector.load %arg3[%c0_2, %c0_3] : memref<8x128xbf16, #tpu.memory_space<vmem>>, vector<8x128xbf16>
    %5 = arith.extf %4 : vector<8x128xbf16> to vector<8x128xf32>
    %c0_4 = arith.constant 0 : index
    %c0_5 = arith.constant 0 : index
    %6 = vector.load %arg4[%c0_4, %c0_5] : memref<128x128xf32, #tpu.memory_space<vmem>>, vector<128x128xf32>
    %cst = arith.constant dense<0.000000e+00> : vector<8x128xf32>
    %7 = tpu.matmul %5, %6, %cst {dimension_numbers = #tpu.dot_dimension_numbers<[1], [0], [0], [1], [0, 0, 1, 1], [], []>} : vector<8x128xf32>, vector<128x128xf32>, vector<8x128xf32> -> vector<8x128xf32>
    %8 = arith.addf %3, %7 : vector<8x128xf32>
    %c0_6 = arith.constant 0 : index
    %c0_7 = arith.constant 0 : index
    %9 = vector.load %arg7[%c0_6, %c0_7] : memref<8x128xf32, #tpu.memory_space<vmem>>, vector<8x128xf32>
    tpu.vector_store %arg7[%c0_6, %c0_7], %8 {strides = array<i32>} : memref<8x128xf32, #tpu.memory_space<vmem>>, vector<8x128xf32>,
    %c0_i32_8 = arith.constant 0 : i32
    %10 = arith.cmpi eq, %arg2, %c0_i32_8 : i32
    %11 = arith.extui %10 : i1 to i32
    %c0_i32_9 = arith.constant 0 : i32
    %12 = arith.cmpi ne, %11, %c0_i32_9 : i32
    scf.if %12 {
      %c0_10 = arith.constant 0 : index
      %c0_11 = arith.constant 0 : index
      %13 = vector.load %arg7[%c0_10, %c0_11] : memref<8x128xf32, #tpu.memory_space<vmem>>, vector<8x128xf32>
      %c0_12 = arith.constant 0 : index
      %c0_13 = arith.constant 0 : index
      %14 = vector.load %arg5[%c0_12, %c0_13] : memref<8x1xf32, #tpu.memory_space<vmem>>, vector<8x1xf32>
      %15 = vector.broadcast %14 : vector<8x1xf32> to vector<8x128xf32>
      %16 = arith.mulf %13, %15 : vector<8x128xf32>
      %c0_14 = arith.constant 0 : index
      %c0_15 = arith.constant 0 : index
      %17 = vector.load %arg6[%c0_14, %c0_15] : memref<8x128xf32, #tpu.memory_space<vmem>>, vector<8x128xf32>
      tpu.vector_store %arg6[%c0_14, %c0_15], %16 {strides = array<i32>} : memref<8x128xf32, #tpu.memory_space<vmem>>, vector<8x128xf32>,
    } else {
    }
    return
  }
  func.func @transform_0(%arg0: i32, %arg1: i32, %arg2: i32) -> (i32, i32) {
    %c0_i32 = arith.constant 0 : i32
    return %arg0, %arg2 : i32, i32
  }
  func.func @transform_1(%arg0: i32, %arg1: i32, %arg2: i32) -> (i32, i32) {
    %c0_i32 = arith.constant 0 : i32
    return %arg2, %arg1 : i32, i32
  }
  func.func @transform_2(%arg0: i32, %arg1: i32, %arg2: i32) -> (i32, i32) {
    %c0_i32 = arith.constant 0 : i32
    %c0_i32_0 = arith.constant 0 : i32
    return %arg0, %c0_i32 : i32, i32
  }
  func.func @transform_3(%arg0: i32, %arg1: i32, %arg2: i32) -> (i32, i32) {
    %c0_i32 = arith.constant 0 : i32
    return %arg0, %arg1 : i32, i32
  }
}

</mosaic_0001>

<llo_original>
// kernel: tpu_custom_call.1
$region0: #{tpu_custom_call.1}
  #allocation0 [shape = 'u32[]', space=smem, size = 0x4, offset = 0x4, fixed_abs, tag = 'smem constant byte address 0x4 - core index']
  #allocation1 [shape = 'u32[144,128]{1,0:T(1,128)}', space=vmem, size = 0x12000, scoped, tag = 'internal scratch']
  #allocation2 [shape = 'f32[8,128]{1,0:T(8,128)}', space=vmem, size = 0x1000, scoped, tag = 'scratch operand']
  %s0 = inlined_call_operand.vmem [shape: bf16[8,128], index: 0, kind: input, shape index: {}]
  %s1 = inlined_call_operand.hbm [shape: f32[128,128], index: 1, kind: input, shape index: {}]
  %s2 = inlined_call_operand.vmem [shape: f32[8,1], index: 2, kind: input, shape index: {}]
  %s3 = inlined_call_operand.hbm [shape: f32[8,128], index: 3, kind: output, shape index: {}]
  %s4 = sld [smem:[#allocation0]]
  $region34: #{tpu_custom_call.1} parent=0
    _
  %s6 = ssub.s32 1, %s4
  %s7 = scalar_select 0, %s6, %s4
  $region1: #{tpu_custom_call.1} parent=0
    #allocation3 [shape = 'u8[65536]{0}', space=vmem, size = 0x10000, scoped, tag = 'input window, operand 1, single buffered']
    #allocation4 [shape = 's32[1]{0}', space=sflag, size = 0x4, scoped, tag = 'scoped memory for tpu_custom_call.1']
    #allocation5 [shape = 's32[1]{0}', space=sflag, size = 0x4, scoped, tag = 'scoped memory for tpu_custom_call.1']
    #allocation6 [shape = 'u8[4096]{0}', space=vmem, size = 0x1000, scoped, tag = 'output window, operand 0, single buffered']
    %8 = vsyncpa [#allocation4], 0
    %9 = vsyncpa [#allocation5], 0
    // Predicated region
    $region2: #{tpu_custom_call.1} parent=1 // pred_check
      _
    $region3: #{tpu_custom_call.1} parent=1 // pred_check_branch
      %11 = sbr.rel (0) target = $region5
    $region4: #{tpu_custom_call.1} parent=1 // pred_region
      _
    $region5: #{tpu_custom_call.1} parent=1 // pred_fallthru
      _
    // Predicated region
    $region6: #{tpu_custom_call.1} parent=1 // pred_check
      _
    $region7: #{tpu_custom_call.1} parent=1 // pred_check_branch
      %13 = sbr.rel (0) target = $region9
    $region8: #{tpu_custom_call.1} parent=1 // pred_region
      %s15 = ssub.s32 2048, 2048
      %16 = vsyncadd [#allocation4], %s15
      %s17 = sshll.u32 [#allocation3], 4
      %s18 = int_to_ptr.vmem [resolvable:$true] %s17
      %23 = dma.hbm_to_vmem [thread:$0]  %s1, 2048, %s18, [#allocation4], 128, 128, 8
    $region9: #{tpu_custom_call.1} parent=1 // pred_fallthru
      _
    // Predicated region
    $region10: #{tpu_custom_call.1} parent=1 // pred_check
      _
    $region11: #{tpu_custom_call.1} parent=1 // pred_check_branch
      %25 = sbr.rel (0) target = $region13
    $region12: #{tpu_custom_call.1} parent=1 // pred_region
      _
    $region13: #{tpu_custom_call.1} parent=1 // pred_fallthru
      _
    // Predicated region
    $region14: #{tpu_custom_call.1} parent=1 // pred_check
      _
    $region15: #{tpu_custom_call.1} parent=1 // pred_check_branch
      %27 = sbr.rel (0) target = $region17
    $region16: #{tpu_custom_call.1} parent=1 // pred_region
      %28 = dma.done [#allocation4], 2048
    $region17: #{tpu_custom_call.1} parent=1 // pred_fallthru
      _
    %p29 = scmp.eq.s32.totalorder 0, 0
    // Predicated region
    $region18: #{tpu_custom_call.1} parent=1 // pred_check
      %p30 = pneg %p29
    $region19: #{tpu_custom_call.1} parent=1 // pred_check_branch
      %32 = sbr.rel (%p30) target = $region21
    $region20: #{tpu_custom_call.1} parent=1 // pred_region
      %33 = vst [vmem:[#allocation2] sm:$0xff] 0.0
    $region21: #{tpu_custom_call.1} parent=1 // pred_fallthru
      _
    %v34 = vld [vmem:[#allocation2] sm:$0xff]
    %v35 = vld [vmem:[%s0] sm:$0xf]
    %v36 = vunpack.c.l.bf16 %v35
    %v37 = vld [vmem:[#allocation3] sm:$0xff]
    %v38 = vld [vmem:[#allocation3 + $0x8] sm:$0xff]
    %v39 = vld [vmem:[#allocation3 + $0x10] sm:$0xff]
    %v40 = vld [vmem:[#allocation3 + $0x18] sm:$0xff]
    %v41 = vld [vmem:[#allocation3 + $0x20] sm:$0xff]
    %v42 = vld [vmem:[#allocation3 + $0x28] sm:$0xff]
    %v43 = vld [vmem:[#allocation3 + $0x30] sm:$0xff]
    %v44 = vld [vmem:[#allocation3 + $0x38] sm:$0xff]
    %v45 = vld [vmem:[#allocation3 + $0x40] sm:$0xff]
    %v46 = vld [vmem:[#allocation3 + $0x48] sm:$0xff]
    %v47 = vld [vmem:[#allocation3 + $0x50] sm:$0xff]
    %v48 = vld [vmem:[#allocation3 + $0x58] sm:$0xff]
    %v49 = vld [vmem:[#allocation3 + $0x60] sm:$0xff]
    %v50 = vld [vmem:[#allocation3 + $0x68] sm:$0xff]
    %v51 = vld [vmem:[#allocation3 + $0x70] sm:$0xff]
    %v52 = vld [vmem:[#allocation3 + $0x78] sm:$0xff]
    %53 = vmatprep.subr.mxu0 0.0
    %54 = vmatpush1.msra.mxu0 %v37
    %55 = vmatprep.subr.mxu0 0.0
    %56 = vmatpush1.msra.mxu0 %v38
    %57 = vmatprep.subr.mxu0 0.0
    %58 = vmatpush1.msra.mxu0 %v39
    %59 = vmatprep.subr.mxu0 0.0
    %60 = vmatpush1.msra.mxu0 %v40
    %61 = vmatprep.subr.mxu0 0.0
    %62 = vmatpush1.msra.mxu0 %v41
    %63 = vmatprep.subr.mxu0 0.0
    %64 = vmatpush1.msra.mxu0 %v42
    %65 = vmatprep.subr.mxu0 0.0
    %66 = vmatpush1.msra.mxu0 %v43
    %67 = vmatprep.subr.mxu0 0.0
    %68 = vmatpush1.msra.mxu0 %v44
    %69 = vmatprep.subr.mxu0 0.0
    %70 = vmatpush1.msra.mxu0 %v45
    %71 = vmatprep.subr.mxu0 0.0
    %72 = vmatpush1.msra.mxu0 %v46
    %73 = vmatprep.subr.mxu0 0.0
    %74 = vmatpush1.msra.mxu0 %v47
    %75 = vmatprep.subr.mxu0 0.0
    %76 = vmatpush1.msra.mxu0 %v48
    %77 = vmatprep.subr.mxu0 0.0
    %78 = vmatpush1.msra.mxu0 %v49
    %79 = vmatprep.subr.mxu0 0.0
    %80 = vmatpush1.msra.mxu0 %v50
    %81 = vmatprep.subr.mxu0 0.0
    %82 = vmatpush1.msra.mxu0 %v51
    %83 = vmatprep.subr.mxu0 0.0
    %84 = vmatpush1.msra.mxu0 %v52
    %85 = vmatprep.subr.mxu0 0.0
    %86 = vmatpush1.msra.mxu0 0.0
    %87 = vmatprep.subr.mxu0 0.0
    %88 = vmatpush1.msra.mxu0 0.0
    %89 = vmatprep.subr.mxu0 0.0
    %90 = vmatpush1.msra.mxu0 0.0
    %91 = vmatprep.subr.mxu0 0.0
    %92 = vmatpush1.msra.mxu0 0.0
    %93 = vmatprep.subr.mxu0 0.0
    %94 = vmatpush1.msra.mxu0 0.0
    %95 = vmatprep.subr.mxu0 0.0
    %96 = vmatpush1.msra.mxu0 0.0
    %97 = vmatprep.subr.mxu0 0.0
    %98 = vmatpush1.msra.mxu0 0.0
    %99 = vmatprep.subr.mxu0 0.0
    %100 = vmatpush1.msra.mxu0 0.0
    %101 = vmatprep.subr.mxu0 0.0
    %102 = vmatpush1.msra.mxu0 0.0
    %103 = vmatprep.subr.mxu0 0.0
    %104 = vmatpush1.msra.mxu0 0.0
    %105 = vmatprep.subr.mxu0 0.0
    %106 = vmatpush1.msra.mxu0 0.0
    %107 = vmatprep.subr.mxu0 0.0
    %108 = vmatpush1.msra.mxu0 0.0
    %109 = vmatprep.subr.mxu0 0.0
    %110 = vmatpush1.msra.mxu0 0.0
    %111 = vmatprep.subr.mxu0 0.0
    %112 = vmatpush1.msra.mxu0 0.0
    %113 = vmatprep.subr.mxu0 0.0
    %114 = vmatpush1.msra.mxu0 0.0
    %115 = vmatprep.subr.mxu0 0.0
    %116 = vmatpush1.msra.mxu0 0.0
    %117 = vmatprep.mubr.f32.mxu0 0.0
    %118 = vmatmul.mubr.f32.gmra.mrb[0].mxu0 %v36
    %v119 = vpop.f32.mrb[0].mxu0
    %v120 = vadd.f32 0.0, %v119
    %v121 = vpop.f32.mrb[0].mxu0
    %122 = vdwg.mxu0
    %v123 = vadd.f32 %v34, %v120
    %124 = vst [vmem:[#allocation2] sm:$0xff] %v123
    // Predicated region
    $region22: #{tpu_custom_call.1} parent=1 // pred_check
      %p125 = pneg %p29
    $region23: #{tpu_custom_call.1} parent=1 // pred_check_branch
      %127 = sbr.rel (%p125) target = $region25
    $region24: #{tpu_custom_call.1} parent=1 // pred_region
      %v128 = vld [vmem:[#allocation2] sm:$0xff]
      %v129 = vld [vmem:[%s2] sm:$0xff]
      %131 = vset.pattern.permute.xlu0 0
      %132 = vperm.xlu0 %131, %v129
      %v133 = vpop.permute.xlu0 %132
      %v135 = vmul.f32 %v128, %v133
      %136 = vst [vmem:[#allocation6] sm:$0xff] %v135
    $region25: #{tpu_custom_call.1} parent=1 // pred_fallthru
      _
    // Predicated region
    $region26: #{tpu_custom_call.1} parent=1 // pred_check
      _
    $region27: #{tpu_custom_call.1} parent=1 // pred_check_branch
      %138 = sbr.rel (0) target = $region29
    $region28: #{tpu_custom_call.1} parent=1 // pred_region
      %s140 = ssub.s32 128, 128
      %141 = vsyncadd [#allocation5], %s140
      %s143 = sshll.u32 [#allocation6], 4
      %s144 = int_to_ptr.vmem [resolvable:$true] %s143
      %146 = dma.vmem_to_hbm [thread:$0]  %s144, 128, %s3, [#allocation5]
    $region29: #{tpu_custom_call.1} parent=1 // pred_fallthru
      _
    // Predicated region
    $region30: #{tpu_custom_call.1} parent=1 // pred_check
      _
    $region31: #{tpu_custom_call.1} parent=1 // pred_check_branch
      %148 = sbr.rel (0) target = $region33
    $region32: #{tpu_custom_call.1} parent=1 // pred_region
      %149 = dma.done [#allocation5], 128
    $region33: #{tpu_custom_call.1} parent=1 // pred_fallthru
      _
    %150 = vsyncpa [#allocation4], 1
    %151 = vsyncpa [#allocation5], 1

</llo_original>
